<compile_context>
chip_gen: v5e
topology: v5e:2x2
jax: 0.10.0
libtpu: 0.0.40
codegen_flags: <defaults>
</compile_context>

<pallas_src>
import math

import jax
import jax.numpy as jnp
from jax.experimental import pallas as pl
from jax.experimental.pallas import tpu as pltpu


def _round_up(a: int, b: int) -> int:
    return ((a + b - 1) // b) * b


def _vmem_budget_bytes() -> int:
    """Per-generation VMEM budget (leave ~25% headroom for Mosaic scratch)."""
    cap = None
    try:
        cap = getattr(pltpu.get_tpu_info(), "vmem_capacity_bytes", None)
    except Exception:
        cap = None
    if not cap:
        cap = 64 * 1024 * 1024  # conservative fallback: v7x per-TC VMEM
    return int(cap) * 3 // 4


def _pick_tk(K: int, cap: int) -> int:
    """Largest K tile <= cap that avoids padding if possible."""
    if K <= cap:
        return K  # single K block spanning the full axis (no 128 constraint)
    cap = max(128, (cap // 128) * 128)
    for cand in range(cap, 127, -128):
        if K % cand == 0:
            return cand
    # No 128-multiple divisor fits: balance the K steps, pad the small tail.
    nsteps = pl.cdiv(K, cap)
    return max(128, _round_up(pl.cdiv(K, nsteps), 128))


def _make_kernels(precision):
    dn = (((1,), (1,)), ((), ()))  # contract shared in_features axis

    def single_k(x_ref, w_ref, o_ref):
        # One K block: write the MXU result straight to the output tile —
        # no accumulator scratch, no extra VMEM sweeps.
        o_ref[...] = jax.lax.dot_general(
            x_ref[...], w_ref[...], dimension_numbers=dn,
            preferred_element_type=jnp.float32, precision=precision,
        ).astype(o_ref.dtype)

    def multi_k(x_ref, w_ref, o_ref, acc_ref):
        @pl.when(pl.program_id(2) == 0)
        def _():
            acc_ref[...] = jnp.zeros_like(acc_ref)

        acc_ref[...] += jax.lax.dot_general(
            x_ref[...], w_ref[...], dimension_numbers=dn,
            preferred_element_type=jnp.float32, precision=precision,
        )

        @pl.when(pl.program_id(2) == pl.num_programs(2) - 1)
        def _():
            o_ref[...] = acc_ref[...].astype(o_ref.dtype)

    return single_k, multi_k


def linear(x: jax.Array, weight: jax.Array, *, tm: int = 512, tn: int = 1024,
           tk: int | None = None, compute_dtype=None,
           precision=None) -> jax.Array:
    """y = x @ weight.T with x: (..., in_features), weight: (out, in)."""
    *lead, K = x.shape
    N, K_w = weight.shape
    assert K == K_w, "in_features mismatch between x and weight"
    M = int(math.prod(lead)) if lead else 1
    out_dtype = x.dtype

    x2 = x.reshape(M, K)
    w2 = weight
    if compute_dtype is not None and jnp.dtype(compute_dtype) != x2.dtype:
        # bf16 fast path: cast once in the wrapper; the kernel re-reads each
        # operand grid_n / grid_m times, so this halves repeated HBM traffic
        # and doubles-to-quadruples MXU throughput.  Accumulation stays f32.
        x2 = x2.astype(compute_dtype)
        w2 = w2.astype(compute_dtype)

    in_bytes = jnp.dtype(x2.dtype).itemsize
    out_bytes = jnp.dtype(out_dtype).itemsize
    sublane = 8 * max(1, 4 // in_bytes)  # 8 for f32, 16 for bf16 packing

    if precision is None and in_bytes == 4:
        # Faithful f32 semantics (multi-pass MXU).  Pass
        # precision=jax.lax.Precision.DEFAULT for max f32 throughput.
        precision = jax.lax.Precision.HIGHEST

    # ---- tile selection -----------------------------------------------------
    tm = min(tm, _round_up(M, sublane))
    tn = min(tn, _round_up(N, 128))

    # v7x has 2 TensorCores: keep >= 2 parallel (i, j) blocks when splittable.
    if pl.cdiv(M, tm) * pl.cdiv(N, tn) < 2:
        if N > 2 * 128:
            tn = _round_up(pl.cdiv(N, 2), 128)
        elif M > sublane:
            tm = _round_up(pl.cdiv(M, 2), sublane)

    budget = _vmem_budget_bytes()

    if tk is None:
        # Largest tk (<= 2048) whose double-buffered footprint fits the budget:
        # 2*tm*tk + 2*tn*tk (inputs) + 2*tm*tn (output) + tm*tn*4 (accumulator)
        fixed = 2 * tm * tn * out_bytes + tm * tn * 4
        avail = max(budget - fixed, 0)
        tk_cap = max(128, min(2048, avail // (2 * (tm + tn) * in_bytes)))
        tk = _pick_tk(K, tk_cap)

    # Layout constraint: tk must be a multiple of 128 unless it spans all of K.
    if tk >= K:
        tk = K
    else:
        tk = max(128, (tk // 128) * 128)
        if tk >= K:
            tk = K
    Kp = K if tk == K else _round_up(K, tk)
    if Kp != K:
        # Zero-pad the contraction axis only (exact for a matmul); M/N edge
        # blocks are handled by Pallas masking, never padded/sliced.
        x2 = jnp.pad(x2, ((0, 0), (0, Kp - K)))
        w2 = jnp.pad(w2, ((0, 0), (0, Kp - K)))

    grid = (pl.cdiv(M, tm), pl.cdiv(N, tn), Kp // tk)
    single_k = grid[2] == 1
    kernel_single, kernel_multi = _make_kernels(precision)

    cost = pl.CostEstimate(
        flops=2 * M * N * K,
        transcendentals=0,
        bytes_accessed=(M * K * grid[1] + N * K * grid[0]) * in_bytes
        + M * N * out_bytes,
    )

    out = pl.pallas_call(
        kernel_single if single_k else kernel_multi,
        out_shape=jax.ShapeDtypeStruct((M, N), out_dtype),
        grid_spec=pltpu.PrefetchScalarGridSpec(
            num_scalar_prefetch=0,
            grid=grid,
            in_specs=[
                pl.BlockSpec((tm, tk), lambda i, j, k: (i, k)),
                pl.BlockSpec((tn, tk), lambda i, j, k: (j, k)),
            ],
            out_specs=pl.BlockSpec((tm, tn), lambda i, j, k: (i, j)),
            scratch_shapes=([] if single_k
                            else [pltpu.VMEM((tm, tn), jnp.float32)]),
        ),
        compiler_params=pltpu.CompilerParams(
            dimension_semantics=("parallel", "parallel", "arbitrary"),
            vmem_limit_bytes=budget,
        ),
        cost_estimate=cost,
    )(x2, w2)

    return out.reshape(*lead, N)


def linear_reference(x, weight):
    return jnp.einsum("...k,nk->...n", x, weight,
                      precision=jax.lax.Precision.HIGHEST)


if __name__ == "__main__":
    batch, seq, in_features, out_features = 2, 8, 32, 64
    key = jax.random.PRNGKey(0)
    kx, kw = jax.random.split(key)

    x = jax.random.normal(kx, (batch, seq, in_features), dtype=jnp.float32)

    # Deterministic init matching nn.init.trunc_normal_(std=std, a=-3s, b=3s).
    std = (2.0 / (in_features + out_features)) ** 0.5
    weight = (std * jax.random.truncated_normal(
        kw, -3.0, 3.0, (out_features, in_features))).astype(jnp.float32)

    out = jax.block_until_ready(linear(x, weight))
    ref = linear_reference(x, weight)
    assert out.shape == (batch, seq, out_features) and out.dtype == x.dtype
    max_err = float(jnp.max(jnp.abs(out - ref)))
    assert jnp.allclose(out, ref, atol=1e-2, rtol=1e-2), f"max abs err {max_err}"

    # Exercise the multi-step K-reduction (accumulator) path with tiny tiles.
    k2, k3 = jax.random.split(kw)
    in2, out2 = 256, 384
    x_b = jax.random.normal(k2, (batch, seq, in2), dtype=jnp.float32)
    std2 = (2.0 / (in2 + out2)) ** 0.5
    w_b = (std2 * jax.random.truncated_normal(
        k3, -3.0, 3.0, (out2, in2))).astype(jnp.float32)
    out_b = jax.block_until_ready(linear(x_b, w_b, tm=8, tn=128, tk=128))
    ref_b = linear_reference(x_b, w_b)
    assert out_b.shape == (batch, seq, out2) and out_b.dtype == x_b.dtype
    max_err_b = float(jnp.max(jnp.abs(out_b - ref_b)))
    assert jnp.allclose(out_b, ref_b, atol=1e-2, rtol=1e-2), \
        f"max abs err {max_err_b}"

    # Exercise the bf16 compute path (f32 accumulation, f32 output).
    out_bf = jax.block_until_ready(
        linear(x_b, w_b, compute_dtype=jnp.bfloat16))
    assert out_bf.shape == (batch, seq, out2) and out_bf.dtype == x_b.dtype
    max_err_bf = float(jnp.max(jnp.abs(out_bf - ref_b)))
    assert jnp.allclose(out_bf, ref_b, atol=5e-2, rtol=5e-2), \
        f"max abs err {max_err_bf}"

    print("KERNEL_OK")
</pallas_src>

<mosaic_0001>
module attributes {stable_mosaic.version = 11 : i64} {
  func.func @single_k(%arg0: i32, %arg1: i32, %arg2: i32, %arg3: memref<8x32xf32, #tpu.memory_space<vmem>>, %arg4: memref<128x32xf32, #tpu.memory_space<vmem>>, %arg5: memref<8x128xf32, #tpu.memory_space<vmem>>) attributes {dimension_semantics = [#tpu.dimension_semantics<parallel>, #tpu.dimension_semantics<parallel>, #tpu.dimension_semantics<arbitrary>], iteration_bounds = array<i64: 2, 1, 1>, scalar_prefetch = 0 : i64, scratch_operands = 0 : i64, tpu.core_type = #tpu.core_type<tc>, window_params = [{transform_indices = @transform_0, window_bounds = array<i64: 8, 32>}, {transform_indices = @transform_1, window_bounds = array<i64: 128, 32>}, {transform_indices = @transform_2, window_bounds = array<i64: 8, 128>}]} {
    %c0 = arith.constant 0 : index
    %c0_0 = arith.constant 0 : index
    %0 = vector.load %arg3[%c0, %c0_0] : memref<8x32xf32, #tpu.memory_space<vmem>>, vector<8x32xf32>
    %c0_1 = arith.constant 0 : index
    %c0_2 = arith.constant 0 : index
    %1 = vector.load %arg4[%c0_1, %c0_2] : memref<128x32xf32, #tpu.memory_space<vmem>>, vector<128x32xf32>
    %cst = arith.constant dense<0.000000e+00> : vector<8x128xf32>
    %2 = tpu.matmul %0, %1, %cst {dimension_numbers = #tpu.dot_dimension_numbers<[1], [1], [0], [0], [0, 0, 1, 0], [], []>, precision = #tpu.contract_precision<fp32>} : vector<8x32xf32>, vector<128x32xf32>, vector<8x128xf32> -> vector<8x128xf32>
    %c0_3 = arith.constant 0 : index
    %c0_4 = arith.constant 0 : index
    %3 = vector.load %arg5[%c0_3, %c0_4] : memref<8x128xf32, #tpu.memory_space<vmem>>, vector<8x128xf32>
    tpu.vector_store %arg5[%c0_3, %c0_4], %2 {strides = array<i32>} : memref<8x128xf32, #tpu.memory_space<vmem>>, vector<8x128xf32>,
    return
  }
  func.func @transform_0(%arg0: i32, %arg1: i32, %arg2: i32) -> (i32, i32) {
    %c0_i32 = arith.constant 0 : i32
    return %arg0, %arg2 : i32, i32
  }
  func.func @transform_1(%arg0: i32, %arg1: i32, %arg2: i32) -> (i32, i32) {
    %c0_i32 = arith.constant 0 : i32
    return %arg1, %arg2 : i32, i32
  }
  func.func @transform_2(%arg0: i32, %arg1: i32, %arg2: i32) -> (i32, i32) {
    %c0_i32 = arith.constant 0 : i32
    return %arg0, %arg1 : i32, i32
  }
}

</mosaic_0001>

<llo_original>
// kernel: tpu_custom_call.1
$region0: #{tpu_custom_call.1}
  #allocation0 [shape = 'u32[]', space=smem, size = 0x4, offset = 0x4, fixed_abs, tag = 'smem constant byte address 0x4 - core index']
  #allocation1 [shape = 'u32[72,128]{1,0:T(1,128)}', space=vmem, size = 0x9000, scoped, tag = 'internal scratch']
  %s0 = inlined_call_operand.vmem [shape: f32[16,32], index: 0, kind: input, shape index: {}]
  %s1 = inlined_call_operand.vmem [shape: f32[64,32], index: 1, kind: input, shape index: {}]
  %s2 = inlined_call_operand.hbm [shape: f32[16,64], index: 2, kind: output, shape index: {}]
  %s3 = sld [smem:[#allocation0]]
  $region41: #{tpu_custom_call.1} parent=0
    _
  %s5 = ssub.s32 1, %s3
  %s6 = scalar_select 0, %s5, %s3
  $region1: #{tpu_custom_call.1} parent=0
    #allocation2 [shape = 'u8[8192]{0}', space=vmem, size = 0x2000, scoped, tag = 'output window, operand 0']
    #allocation3 [shape = 's32[2]{0}', space=sflag, size = 0x8, scoped, tag = 'scoped memory for tpu_custom_call.1']
    %7 = vsyncpa [#allocation3], 0
    %s8 = scalar_lea.sflag [#allocation3], 1
    %9 = vsyncpa %s8, 0
    loop: start=0, step=1, limit=4
    $region2: #{tpu_custom_call.1} parent=1 // loop_pre_header
      _
    $region3: #{tpu_custom_call.1} parent=1 // loop_header
      %s11 = sphi 0, %s15
      %p12 = scmp.ge.s32.totalorder %s11, 4
      %s18 = sphi 0, %s37
      %s19 = sphi 0, %s33
      %s20 = sphi 0, %s29
      %s21 = sphi 0, %s18
      %s22 = sphi 0, %s19
      %s23 = sphi 0, %s20
      %s24 = sphi 0, %s21
      %s25 = sphi 0, %s22
      %s26 = sphi 0, %s23
      %s42 = sphi 0, %s44
      %s45 = sphi 0, %s42
      %s46 = sphi 0, %s45
      %s62 = sphi 0, %s46
      %s70 = sphi 0, %s72
      %s73 = sphi 0, %s70
      %s74 = sphi 0, %s73
      %s90 = sphi 0, %s74
      %s98 = sphi 0, %s100
      %s101 = sphi 0, %s98
      %s102 = sphi 0, %s101
      %s118 = sphi 0, %s102
    $region4: #{tpu_custom_call.1} parent=1 // loop_header_branch
      %14 = sbr.rel (%p12) target = $region8
    $region5: #{tpu_custom_call.1} parent=1 // loop_body
      %s16 = ssub.s32 %s11, 1
      %s17 = ssub.s32 %s11, 2
      %s27 = sadd.s32 1, %s20
      %p28 = scmp.ge.s32.totalorder %s27, 1
      %s29 = scalar_select %p28, 0, %s27
      %s30 = sadd.s32 1, %s19
      %s31 = scalar_select %p28, %s30, %s19
      %p32 = scmp.ge.s32.totalorder %s31, 1
      %s33 = scalar_select %p32, 0, %s31
      %s34 = sadd.s32 1, %s18
      %s35 = scalar_select %p32, %s34, %s18
      %p36 = scmp.ge.s32.totalorder %s35, 2
      %s37 = scalar_select %p36, 0, %s35
      %s38 = ssub.s32 %s18, %s37
      %s39 = ssub.s32 %s20, %s29
      %s40 = sor.u32 %s38, %s39
      %p41 = scmp.eq.s32.totalorder %s40, 0
      %s43 = sadd.s32 %s42, 1
      %s44 = scalar_select %p41, %s42, %s43
      %p47 = pneg %p41
      %p48 = scmp.eq.s32.totalorder %s11, 1
      %p49 = por %p47, %p48
      %p50 = scmp.ne.s32.totalorder %s42, %s45
      %p51 = scmp.eq.s32.totalorder %s11, 0
      %p52 = por %p50, %p51
      %p53 = scmp.ne.s32.totalorder %s42, %s45
      %p54 = scmp.eq.s32.totalorder %s16, 1
      %p55 = por %p53, %p54
      %p56 = scmp.ne.s32.totalorder %s45, %s46
      %p57 = scmp.eq.s32.totalorder %s16, 0
      %p58 = por %p56, %p57
      %p59 = scmp.ne.s32.totalorder %s45, %s46
      %p60 = scmp.eq.s32.totalorder %s17, 1
      %p61 = por %p59, %p60
      %p63 = scmp.ne.s32.totalorder %s46, %s62
      %p64 = scmp.eq.s32.totalorder %s17, 0
      %p65 = por %p63, %p64
      %s66 = ssub.s32 %s19, %s33
      %s67 = ssub.s32 %s20, %s29
      %s68 = sor.u32 %s66, %s67
      %p69 = scmp.eq.s32.totalorder %s68, 0
      %s71 = sadd.s32 %s70, 1
      %s72 = scalar_select %p69, %s70, %s71
      %p75 = pneg %p69
      %p76 = scmp.eq.s32.totalorder %s11, 1
      %p77 = por %p75, %p76
      %p78 = scmp.ne.s32.totalorder %s70, %s73
      %p79 = scmp.eq.s32.totalorder %s11, 0
      %p80 = por %p78, %p79
      %p81 = scmp.ne.s32.totalorder %s70, %s73
      %p82 = scmp.eq.s32.totalorder %s16, 1
      %p83 = por %p81, %p82
      %p84 = scmp.ne.s32.totalorder %s73, %s74
      %p85 = scmp.eq.s32.totalorder %s16, 0
      %p86 = por %p84, %p85
      %p87 = scmp.ne.s32.totalorder %s73, %s74
      %p88 = scmp.eq.s32.totalorder %s17, 1
      %p89 = por %p87, %p88
      %p91 = scmp.ne.s32.totalorder %s74, %s90
      %p92 = scmp.eq.s32.totalorder %s17, 0
      %p93 = por %p91, %p92
      %s94 = ssub.s32 %s18, %s37
      %s95 = ssub.s32 %s19, %s33
      %s96 = sor.u32 %s94, %s95
      %p97 = scmp.eq.s32.totalorder %s96, 0
      %s99 = sadd.s32 %s98, 1
      %s100 = scalar_select %p97, %s98, %s99
      %p103 = pneg %p97
      %p104 = scmp.eq.s32.totalorder %s11, 1
      %p105 = por %p103, %p104
      %p106 = scmp.ne.s32.totalorder %s98, %s101
      %p107 = scmp.eq.s32.totalorder %s11, 0
      %p108 = por %p106, %p107
      %p109 = scmp.ne.s32.totalorder %s98, %s101
      %p110 = scmp.eq.s32.totalorder %s16, 1
      %p111 = por %p109, %p110
      %p112 = scmp.ne.s32.totalorder %s101, %s102
      %p113 = scmp.eq.s32.totalorder %s16, 0
      %p114 = por %p112, %p113
      %p115 = scmp.ne.s32.totalorder %s101, %s102
      %p116 = scmp.eq.s32.totalorder %s17, 1
      %p117 = por %p115, %p116
      %p119 = scmp.ne.s32.totalorder %s102, %s118
      %p120 = scmp.eq.s32.totalorder %s17, 0
      %p121 = por %p119, %p120
      %p122 = scmp.le.s32.totalorder 1, %s11
      %p123 = scmp.lt.s32.totalorder %s11, 3
      %p124 = pnand %p122, %p123
      %p125 = pneg %p124
      // Predicated region
      $region9: #{tpu_custom_call.1} parent=5 // pred_check
        _
      $region10: #{tpu_custom_call.1} parent=5 // pred_check_branch
        %127 = sbr.rel (%p124) target = $region12
      $region11: #{tpu_custom_call.1} parent=5 // pred_region
        %s128 = ssub.s32 %s11, 1
        // Predicated region
        $region13: #{tpu_custom_call.1} parent=11 // pred_check
          %p129 = pneg %p86
        $region14: #{tpu_custom_call.1} parent=11 // pred_check_branch
          %131 = sbr.rel (%p129) target = $region16
        $region15: #{tpu_custom_call.1} parent=11 // pred_region
          %s132 = smul.u32 16, %s22
          %s133 = ssub.s32 8, %s132
          %s134 = smul.u32 8, %s133
          %p135 = scmp.lt.s32.totalorder %s132, 7
          %s136 = scalar_select %p135, %s132, 7
          %p137 = scmp.lt.s32.totalorder %s23, 0
          %s138 = scalar_select %p137, %s23, 0
          %s139 = sadd.s32 %s138, %s136
          %s140 = smul.addr %s139, 8
          %s141 = scalar_lea.vmem %s1, %s140
          %s142 = smul.u32 16, %s22
          %s143 = ssub.s32 8, %s142
          %s144 = smul.u32 8, %s143
        $region16: #{tpu_custom_call.1} parent=11 // pred_fallthru
          _
      $region12: #{tpu_custom_call.1} parent=5 // pred_fallthru
        _
      %p145 = scmp.lt.s32.totalorder %s11, 2
      // Predicated region
      $region17: #{tpu_custom_call.1} parent=5 // pred_check
        %p146 = pneg %p145
      $region18: #{tpu_custom_call.1} parent=5 // pred_check_branch
        %148 = sbr.rel (%p146) target = $region20
      $region19: #{tpu_custom_call.1} parent=5 // pred_region
        // Predicated region
        $region21: #{tpu_custom_call.1} parent=19 // pred_check
          %p149 = pneg %p52
        $region22: #{tpu_custom_call.1} parent=19 // pred_check_branch
          %151 = sbr.rel (%p149) target = $region24
        $region23: #{tpu_custom_call.1} parent=19 // pred_region
          %p152 = scmp.lt.s32.totalorder %s18, 1
          %s153 = scalar_select %p152, %s18, 1
          %p154 = scmp.lt.s32.totalorder %s20, 0
          %s155 = scalar_select %p154, %s20, 0
          %s156 = sadd.s32 %s155, %s153
          %s157 = smul.addr %s156, 8
          %s158 = scalar_lea.vmem %s0, %s157
        $region24: #{tpu_custom_call.1} parent=19 // pred_fallthru
          _
      $region20: #{tpu_custom_call.1} parent=5 // pred_fallthru
        _
      %p159 = scmp.le.s32.totalorder 1, %s11
      %p160 = scmp.lt.s32.totalorder %s11, 3
      %p161 = pnand %p159, %p160
      %p162 = pneg %p161
      // Predicated region
      $region25: #{tpu_custom_call.1} parent=5 // pred_check
        _
      $region26: #{tpu_custom_call.1} parent=5 // pred_check_branch
        %164 = sbr.rel (%p161) target = $region28
      $region27: #{tpu_custom_call.1} parent=5 // pred_region
        %s165 = ssub.s32 %s11, 1
        %p166 = scmp.lt.s32.totalorder %s21, 1
        %s167 = scalar_select %p166, %s21, 1
        %p168 = scmp.lt.s32.totalorder %s23, 0
        %s169 = scalar_select %p168, %s23, 0
        %s170 = sadd.s32 %s169, %s167
        %s171 = smul.addr %s170, 8
        %s172 = scalar_lea.vmem %s0, %s171
        %p173 = pneg %p58
        %p174 = pneg %p55
        %s175 = smul.u32 16, %s22
        %s176 = ssub.s32 8, %s175
        %s177 = smul.u32 8, %s176
        %p178 = scmp.lt.s32.totalorder %s175, 7
        %s179 = scalar_select %p178, %s175, 7
        %p180 = scmp.lt.s32.totalorder %s23, 0
        %s181 = scalar_select %p180, %s23, 0
        %s182 = sadd.s32 %s181, %s179
        %s183 = smul.addr %s182, 8
        %s184 = scalar_lea.vmem %s1, %s183
        %p185 = pneg %p86
        %p186 = pneg %p83
        %p187 = pneg %p114
        %p188 = pneg %p111
        %s189 = sand.u32 %s101, 1
        %s190 = scalar_lea.sflag [#allocation3], %s189
        %s191 = sand.u32 %s101, 1
        %s192 = smul.addr %s191, 8
        %s193 = scalar_lea.vmem [#allocation2], %s192
        %p194 = scmp.lt.s32.totalorder %s21, 1
        %s195 = scalar_select %p194, %s21, 1
        %p196 = scmp.lt.s32.totalorder %s23, 0
        %s197 = scalar_select %p196, %s23, 0
        %s198 = sadd.s32 %s197, %s195
        %s199 = smul.addr %s198, 8
        %s200 = scalar_lea.vmem %s0, %s199
        %s201 = smul.u32 16, %s22
        %s202 = ssub.s32 8, %s201
        %s203 = smul.u32 8, %s202
        %p204 = scmp.lt.s32.totalorder %s201, 7
        %s205 = scalar_select %p204, %s201, 7
        %p206 = scmp.lt.s32.totalorder %s23, 0
        %s207 = scalar_select %p206, %s23, 0
        %s208 = sadd.s32 %s207, %s205
        %s209 = smul.addr %s208, 8
        %s210 = scalar_lea.vmem %s1, %s209
        %s211 = smul.u32 16, %s22
        %s212 = ssub.s32 8, %s211
        %s213 = smul.u32 8, %s212
        %v214 = vld [vmem:[%s200] sm:$0xff]
        %v215 = vld [vmem:[%s210] sm:$0xff]
        %v216 = vld [vmem:[%s210 + $0x8] sm:$0xff]
        %v217 = vld [vmem:[%s210 + $0x10] sm:$0xff]
        %v218 = vld [vmem:[%s210 + $0x18] sm:$0xff]
        %v219 = vld [vmem:[%s210 + $0x20] sm:$0xff]
        %v220 = vld [vmem:[%s210 + $0x28] sm:$0xff]
        %v221 = vld [vmem:[%s210 + $0x30] sm:$0xff]
        %v222 = vld [vmem:[%s210 + $0x38] sm:$0xff]
        %v223 = vld [vmem:[%s210 + $0x40] sm:$0xff]
        %v224 = vld [vmem:[%s210 + $0x48] sm:$0xff]
        %v225 = vld [vmem:[%s210 + $0x50] sm:$0xff]
        %v226 = vld [vmem:[%s210 + $0x58] sm:$0xff]
        %v227 = vld [vmem:[%s210 + $0x60] sm:$0xff]
        %v228 = vld [vmem:[%s210 + $0x68] sm:$0xff]
        %v229 = vld [vmem:[%s210 + $0x70] sm:$0xff]
        %v230 = vld [vmem:[%s210 + $0x78] sm:$0xff]
        %vm231 = vcmask 261120
        %v233 = vsel %vm231, %v214, 0
        %v236 = vsel %vm231, %v215, 0
        %v239 = vsel %vm231, %v216, 0
        %v242 = vsel %vm231, %v217, 0
        %v245 = vsel %vm231, %v218, 0
        %v248 = vsel %vm231, %v219, 0
        %v251 = vsel %vm231, %v220, 0
        %v254 = vsel %vm231, %v221, 0
        %v257 = vsel %vm231, %v222, 0
        %v260 = vsel %vm231, %v223, 0
        %v263 = vsel %vm231, %v224, 0
        %v266 = vsel %vm231, %v225, 0
        %v269 = vsel %vm231, %v226, 0
        %v272 = vsel %vm231, %v227, 0
        %v275 = vsel %vm231, %v228, 0
        %v278 = vsel %vm231, %v229, 0
        %v281 = vsel %vm231, %v230, 0
        %v283 = vand.u32 %v281, 4294901760
        %284 = vmatpush.xpose.msra.mxu0 %v283
        %v285 = vand.u32 %v278, 4294901760
        %286 = vmatpush.xpose.msra.mxu0 %v285
        %v287 = vand.u32 %v275, 4294901760
        %288 = vmatpush.xpose.msra.mxu0 %v287
        %v289 = vand.u32 %v272, 4294901760
        %290 = vmatpush.xpose.msra.mxu0 %v289
        %v291 = vand.u32 %v269, 4294901760
        %292 = vmatpush.xpose.msra.mxu0 %v291
        %v293 = vand.u32 %v266, 4294901760
        %294 = vmatpush.xpose.msra.mxu0 %v293
        %v295 = vand.u32 %v263, 4294901760
        %296 = vmatpush.xpose.msra.mxu0 %v295
        %v297 = vand.u32 %v260, 4294901760
        %298 = vmatpush.xpose.msra.mxu0 %v297
        %v299 = vand.u32 %v257, 4294901760
        %300 = vmatpush.xpose.msra.mxu0 %v299
        %v301 = vand.u32 %v254, 4294901760
        %302 = vmatpush.xpose.msra.mxu0 %v301
        %v303 = vand.u32 %v251, 4294901760
        %304 = vmatpush.xpose.msra.mxu0 %v303
        %v305 = vand.u32 %v248, 4294901760
        %306 = vmatpush.xpose.msra.mxu0 %v305
        %v307 = vand.u32 %v245, 4294901760
        %308 = vmatpush.xpose.msra.mxu0 %v307
        %v309 = vand.u32 %v242, 4294901760
        %310 = vmatpush.xpose.msra.mxu0 %v309
        %v311 = vand.u32 %v239, 4294901760
        %312 = vmatpush.xpose.msra.mxu0 %v311
        %v313 = vand.u32 %v236, 4294901760
        %314 = vmatpush.xpose.msra.mxu0 %v313
        %v315 = vand.u32 %v233, 4294901760
        %v316 = vsub.f32 %v233, %v315
        %v317 = vand.u32 %v316, 4294901760
        %v318 = vsub.f32 %v316, %v317
        %v319 = vand.u32 %v318, 4294901760
        %320 = vmatmul.f32.gmra.mxu0 %v319
        %v321 = vpop.f32.mrf.mxu0
        %v322 = vadd.f32 0.0, %v321
        %323 = vdwg.mxu0
        %v324 = vand.u32 %v281, 4294901760
        %v325 = vsub.f32 %v281, %v324
        %v326 = vand.u32 %v325, 4294901760
        %v327 = vsub.f32 %v325, %v326
        %v328 = vand.u32 %v327, 4294901760
        %329 = vmatpush.xpose.msra.mxu0 %v328
        %v330 = vand.u32 %v278, 4294901760
        %v331 = vsub.f32 %v278, %v330
        %v332 = vand.u32 %v331, 4294901760
        %v333 = vsub.f32 %v331, %v332
        %v334 = vand.u32 %v333, 4294901760
        %335 = vmatpush.xpose.msra.mxu0 %v334
        %v336 = vand.u32 %v275, 4294901760
        %v337 = vsub.f32 %v275, %v336
        %v338 = vand.u32 %v337, 4294901760
        %v339 = vsub.f32 %v337, %v338
        %v340 = vand.u32 %v339, 4294901760
        %341 = vmatpush.xpose.msra.mxu0 %v340
        %v342 = vand.u32 %v272, 4294901760
        %v343 = vsub.f32 %v272, %v342
        %v344 = vand.u32 %v343, 4294901760
        %v345 = vsub.f32 %v343, %v344
        %v346 = vand.u32 %v345, 4294901760
        %347 = vmatpush.xpose.msra.mxu0 %v346
        %v348 = vand.u32 %v269, 4294901760
        %v349 = vsub.f32 %v269, %v348
        %v350 = vand.u32 %v349, 4294901760
        %v351 = vsub.f32 %v349, %v350
        %v352 = vand.u32 %v351, 4294901760
        %353 = vmatpush.xpose.msra.mxu0 %v352
        %v354 = vand.u32 %v266, 4294901760
        %v355 = vsub.f32 %v266, %v354
        %v356 = vand.u32 %v355, 4294901760
        %v357 = vsub.f32 %v355, %v356
        %v358 = vand.u32 %v357, 4294901760
        %359 = vmatpush.xpose.msra.mxu0 %v358
        %v360 = vand.u32 %v263, 4294901760
        %v361 = vsub.f32 %v263, %v360
        %v362 = vand.u32 %v361, 4294901760
        %v363 = vsub.f32 %v361, %v362
        %v364 = vand.u32 %v363, 4294901760
        %365 = vmatpush.xpose.msra.mxu0 %v364
        %v366 = vand.u32 %v260, 4294901760
        %v367 = vsub.f32 %v260, %v366
        %v368 = vand.u32 %v367, 4294901760
        %v369 = vsub.f32 %v367, %v368
        %v370 = vand.u32 %v369, 4294901760
        %371 = vmatpush.xpose.msra.mxu0 %v370
        %v372 = vand.u32 %v257, 4294901760
        %v373 = vsub.f32 %v257, %v372
        %v374 = vand.u32 %v373, 4294901760
        %v375 = vsub.f32 %v373, %v374
        %v376 = vand.u32 %v375, 4294901760
        %377 = vmatpush.xpose.msra.mxu0 %v376
        %v378 = vand.u32 %v254, 4294901760
        %v379 = vsub.f32 %v254, %v378
        %v380 = vand.u32 %v379, 4294901760
        %v381 = vsub.f32 %v379, %v380
        %v382 = vand.u32 %v381, 4294901760
        %383 = vmatpush.xpose.msra.mxu0 %v382
        %v384 = vand.u32 %v251, 4294901760
        %v385 = vsub.f32 %v251, %v384
        %v386 = vand.u32 %v385, 4294901760
        %v387 = vsub.f32 %v385, %v386
        %v388 = vand.u32 %v387, 4294901760
        %389 = vmatpush.xpose.msra.mxu0 %v388
        %v390 = vand.u32 %v248, 4294901760
        %v391 = vsub.f32 %v248, %v390
        %v392 = vand.u32 %v391, 4294901760
        %v393 = vsub.f32 %v391, %v392
        %v394 = vand.u32 %v393, 4294901760
        %395 = vmatpush.xpose.msra.mxu0 %v394
        %v396 = vand.u32 %v245, 4294901760
        %v397 = vsub.f32 %v245, %v396
        %v398 = vand.u32 %v397, 4294901760
        %v399 = vsub.f32 %v397, %v398
        %v400 = vand.u32 %v399, 4294901760
        %401 = vmatpush.xpose.msra.mxu0 %v400
        %v402 = vand.u32 %v242, 4294901760
        %v403 = vsub.f32 %v242, %v402
        %v404 = vand.u32 %v403, 4294901760
        %v405 = vsub.f32 %v403, %v404
        %v406 = vand.u32 %v405, 4294901760
        %407 = vmatpush.xpose.msra.mxu0 %v406
        %v408 = vand.u32 %v239, 4294901760
        %v409 = vsub.f32 %v239, %v408
        %v410 = vand.u32 %v409, 4294901760
        %v411 = vsub.f32 %v409, %v410
        %v412 = vand.u32 %v411, 4294901760
        %413 = vmatpush.xpose.msra.mxu0 %v412
        %v414 = vand.u32 %v236, 4294901760
        %v415 = vsub.f32 %v236, %v414
        %v416 = vand.u32 %v415, 4294901760
        %v417 = vsub.f32 %v415, %v416
        %v418 = vand.u32 %v417, 4294901760
        %419 = vmatpush.xpose.msra.mxu0 %v418
        %v420 = vand.u32 %v233, 4294901760
        %421 = vmatmul.f32.gmra.mxu0 %v420
        %v422 = vpop.f32.mrf.mxu0
        %v423 = vadd.f32 %v322, %v422
        %424 = vdwg.mxu0
        %v425 = vand.u32 %v281, 4294901760
        %v426 = vsub.f32 %v281, %v425
        %427 = vmatpush.xpose.msra.mxu0 %v426
        %v428 = vand.u32 %v278, 4294901760
        %v429 = vsub.f32 %v278, %v428
        %430 = vmatpush.xpose.msra.mxu0 %v429
        %v431 = vand.u32 %v275, 4294901760
        %v432 = vsub.f32 %v275, %v431
        %433 = vmatpush.xpose.msra.mxu0 %v432
        %v434 = vand.u32 %v272, 4294901760
        %v435 = vsub.f32 %v272, %v434
        %436 = vmatpush.xpose.msra.mxu0 %v435
        %v437 = vand.u32 %v269, 4294901760
        %v438 = vsub.f32 %v269, %v437
        %439 = vmatpush.xpose.msra.mxu0 %v438
        %v440 = vand.u32 %v266, 4294901760
        %v441 = vsub.f32 %v266, %v440
        %442 = vmatpush.xpose.msra.mxu0 %v441
        %v443 = vand.u32 %v263, 4294901760
        %v444 = vsub.f32 %v263, %v443
        %445 = vmatpush.xpose.msra.mxu0 %v444
        %v446 = vand.u32 %v260, 4294901760
        %v447 = vsub.f32 %v260, %v446
        %448 = vmatpush.xpose.msra.mxu0 %v447
        %v449 = vand.u32 %v257, 4294901760
        %v450 = vsub.f32 %v257, %v449
        %451 = vmatpush.xpose.msra.mxu0 %v450
        %v452 = vand.u32 %v254, 4294901760
        %v453 = vsub.f32 %v254, %v452
        %454 = vmatpush.xpose.msra.mxu0 %v453
        %v455 = vand.u32 %v251, 4294901760
        %v456 = vsub.f32 %v251, %v455
        %457 = vmatpush.xpose.msra.mxu0 %v456
        %v458 = vand.u32 %v248, 4294901760
        %v459 = vsub.f32 %v248, %v458
        %460 = vmatpush.xpose.msra.mxu0 %v459
        %v461 = vand.u32 %v245, 4294901760
        %v462 = vsub.f32 %v245, %v461
        %463 = vmatpush.xpose.msra.mxu0 %v462
        %v464 = vand.u32 %v242, 4294901760
        %v465 = vsub.f32 %v242, %v464
        %466 = vmatpush.xpose.msra.mxu0 %v465
        %v467 = vand.u32 %v239, 4294901760
        %v468 = vsub.f32 %v239, %v467
        %469 = vmatpush.xpose.msra.mxu0 %v468
        %v470 = vand.u32 %v236, 4294901760
        %v471 = vsub.f32 %v236, %v470
        %472 = vmatpush.xpose.msra.mxu0 %v471
        %v473 = vand.u32 %v233, 4294901760
        %v474 = vsub.f32 %v233, %v473
        %475 = vmatmul.f32.gmra.mxu0 %v474
        %v476 = vpop.f32.mrf.mxu0
        %v477 = vadd.f32 %v423, %v476
        %478 = vdwg.mxu0
        %v479 = vand.u32 %v281, 4294901760
        %480 = vmatpush.xpose.msra.mxu0 %v479
        %v481 = vand.u32 %v278, 4294901760
        %482 = vmatpush.xpose.msra.mxu0 %v481
        %v483 = vand.u32 %v275, 4294901760
        %484 = vmatpush.xpose.msra.mxu0 %v483
        %v485 = vand.u32 %v272, 4294901760
        %486 = vmatpush.xpose.msra.mxu0 %v485
        %v487 = vand.u32 %v269, 4294901760
        %488 = vmatpush.xpose.msra.mxu0 %v487
        %v489 = vand.u32 %v266, 4294901760
        %490 = vmatpush.xpose.msra.mxu0 %v489
        %v491 = vand.u32 %v263, 4294901760
        %492 = vmatpush.xpose.msra.mxu0 %v491
        %v493 = vand.u32 %v260, 4294901760
        %494 = vmatpush.xpose.msra.mxu0 %v493
        %v495 = vand.u32 %v257, 4294901760
        %496 = vmatpush.xpose.msra.mxu0 %v495
        %v497 = vand.u32 %v254, 4294901760
        %498 = vmatpush.xpose.msra.mxu0 %v497
        %v499 = vand.u32 %v251, 4294901760
        %500 = vmatpush.xpose.msra.mxu0 %v499
        %v501 = vand.u32 %v248, 4294901760
        %502 = vmatpush.xpose.msra.mxu0 %v501
        %v503 = vand.u32 %v245, 4294901760
        %504 = vmatpush.xpose.msra.mxu0 %v503
        %v505 = vand.u32 %v242, 4294901760
        %506 = vmatpush.xpose.msra.mxu0 %v505
        %v507 = vand.u32 %v239, 4294901760
        %508 = vmatpush.xpose.msra.mxu0 %v507
        %v509 = vand.u32 %v236, 4294901760
        %510 = vmatpush.xpose.msra.mxu0 %v509
        %v511 = vand.u32 %v233, 4294901760
        %v512 = vsub.f32 %v233, %v511
        %v513 = vand.u32 %v512, 4294901760
        %514 = vmatmul.f32.gmra.mxu0 %v513
        %v515 = vpop.f32.mrf.mxu0
        %v516 = vadd.f32 %v477, %v515
        %517 = vdwg.mxu0
        %v518 = vand.u32 %v281, 4294901760
        %v519 = vsub.f32 %v281, %v518
        %v520 = vand.u32 %v519, 4294901760
        %521 = vmatpush.xpose.msra.mxu0 %v520
        %v522 = vand.u32 %v278, 4294901760
        %v523 = vsub.f32 %v278, %v522
        %v524 = vand.u32 %v523, 4294901760
        %525 = vmatpush.xpose.msra.mxu0 %v524
        %v526 = vand.u32 %v275, 4294901760
        %v527 = vsub.f32 %v275, %v526
        %v528 = vand.u32 %v527, 4294901760
        %529 = vmatpush.xpose.msra.mxu0 %v528
        %v530 = vand.u32 %v272, 4294901760
        %v531 = vsub.f32 %v272, %v530
        %v532 = vand.u32 %v531, 4294901760
        %533 = vmatpush.xpose.msra.mxu0 %v532
        %v534 = vand.u32 %v269, 4294901760
        %v535 = vsub.f32 %v269, %v534
        %v536 = vand.u32 %v535, 4294901760
        %537 = vmatpush.xpose.msra.mxu0 %v536
        %v538 = vand.u32 %v266, 4294901760
        %v539 = vsub.f32 %v266, %v538
        %v540 = vand.u32 %v539, 4294901760
        %541 = vmatpush.xpose.msra.mxu0 %v540
        %v542 = vand.u32 %v263, 4294901760
        %v543 = vsub.f32 %v263, %v542
        %v544 = vand.u32 %v543, 4294901760
        %545 = vmatpush.xpose.msra.mxu0 %v544
        %v546 = vand.u32 %v260, 4294901760
        %v547 = vsub.f32 %v260, %v546
        %v548 = vand.u32 %v547, 4294901760
        %549 = vmatpush.xpose.msra.mxu0 %v548
        %v550 = vand.u32 %v257, 4294901760
        %v551 = vsub.f32 %v257, %v550
        %v552 = vand.u32 %v551, 4294901760
        %553 = vmatpush.xpose.msra.mxu0 %v552
        %v554 = vand.u32 %v254, 4294901760
        %v555 = vsub.f32 %v254, %v554
        %v556 = vand.u32 %v555, 4294901760
        %557 = vmatpush.xpose.msra.mxu0 %v556
        %v558 = vand.u32 %v251, 4294901760
        %v559 = vsub.f32 %v251, %v558
        %v560 = vand.u32 %v559, 4294901760
        %561 = vmatpush.xpose.msra.mxu0 %v560
        %v562 = vand.u32 %v248, 4294901760
        %v563 = vsub.f32 %v248, %v562
        %v564 = vand.u32 %v563, 4294901760
        %565 = vmatpush.xpose.msra.mxu0 %v564
        %v566 = vand.u32 %v245, 4294901760
        %v567 = vsub.f32 %v245, %v566
        %v568 = vand.u32 %v567, 4294901760
        %569 = vmatpush.xpose.msra.mxu0 %v568
        %v570 = vand.u32 %v242, 4294901760
        %v571 = vsub.f32 %v242, %v570
        %v572 = vand.u32 %v571, 4294901760
        %573 = vmatpush.xpose.msra.mxu0 %v572
        %v574 = vand.u32 %v239, 4294901760
        %v575 = vsub.f32 %v239, %v574
        %v576 = vand.u32 %v575, 4294901760
        %577 = vmatpush.xpose.msra.mxu0 %v576
        %v578 = vand.u32 %v236, 4294901760
        %v579 = vsub.f32 %v236, %v578
        %v580 = vand.u32 %v579, 4294901760
        %581 = vmatpush.xpose.msra.mxu0 %v580
        %v582 = vand.u32 %v233, 4294901760
        %583 = vmatmul.f32.gmra.mxu0 %v582
        %v584 = vpop.f32.mrf.mxu0
        %v585 = vadd.f32 %v516, %v584
        %586 = vdwg.mxu0
        %v587 = vand.u32 %v281, 4294901760
        %588 = vmatpush.xpose.msra.mxu0 %v587
        %v589 = vand.u32 %v278, 4294901760
        %590 = vmatpush.xpose.msra.mxu0 %v589
        %v591 = vand.u32 %v275, 4294901760
        %592 = vmatpush.xpose.msra.mxu0 %v591
        %v593 = vand.u32 %v272, 4294901760
        %594 = vmatpush.xpose.msra.mxu0 %v593
        %v595 = vand.u32 %v269, 4294901760
        %596 = vmatpush.xpose.msra.mxu0 %v595
        %v597 = vand.u32 %v266, 4294901760
        %598 = vmatpush.xpose.msra.mxu0 %v597
        %v599 = vand.u32 %v263, 4294901760
        %600 = vmatpush.xpose.msra.mxu0 %v599
        %v601 = vand.u32 %v260, 4294901760
        %602 = vmatpush.xpose.msra.mxu0 %v601
        %v603 = vand.u32 %v257, 4294901760
        %604 = vmatpush.xpose.msra.mxu0 %v603
        %v605 = vand.u32 %v254, 4294901760
        %606 = vmatpush.xpose.msra.mxu0 %v605
        %v607 = vand.u32 %v251, 4294901760
        %608 = vmatpush.xpose.msra.mxu0 %v607
        %v609 = vand.u32 %v248, 4294901760
        %610 = vmatpush.xpose.msra.mxu0 %v609
        %v611 = vand.u32 %v245, 4294901760
        %612 = vmatpush.xpose.msra.mxu0 %v611
        %v613 = vand.u32 %v242, 4294901760
        %614 = vmatpush.xpose.msra.mxu0 %v613
        %v615 = vand.u32 %v239, 4294901760
        %616 = vmatpush.xpose.msra.mxu0 %v615
        %v617 = vand.u32 %v236, 4294901760
        %618 = vmatpush.xpose.msra.mxu0 %v617
        %v619 = vand.u32 %v233, 4294901760
        %620 = vmatmul.f32.gmra.mxu0 %v619
        %v621 = vpop.f32.mrf.mxu0
        %v622 = vadd.f32 %v585, %v621
        %623 = vdwg.mxu0
        %624 = vst [vmem:[%s193] sm:$0xff] %v622
        %s625 = sand.u32 %s101, 1
        %s626 = scalar_lea.sflag [#allocation3], %s625
        %s627 = sand.u32 %s101, 1
        %s628 = smul.addr %s627, 8
        %s629 = scalar_lea.vmem [#allocation2], %s628
        // Predicated region
        $region29: #{tpu_custom_call.1} parent=27 // pred_check
          %p630 = pneg %p111
        $region30: #{tpu_custom_call.1} parent=27 // pred_check_branch
          %632 = sbr.rel (%p630) target = $region32
        $region31: #{tpu_custom_call.1} parent=27 // pred_region
          %634 = vsyncadd %s626, 0
          %s635 = sadd.s32 %s22, %s21
          %s636 = smul.addr %s635, 8
          %s637 = scalar_lea.hbm %s2, %s636
          %s639 = sshll.u32 %s629, 4
          %s640 = int_to_ptr.vmem [resolvable:$true] %s639
          %s641 = sshll.u32 %s637, 4
          %s642 = int_to_ptr.hbm [resolvable:$true] %s641
          %644 = dma.vmem_to_hbm [thread:$0]  %s640, 128, %s642, %s626
        $region32: #{tpu_custom_call.1} parent=27 // pred_fallthru
          _
      $region28: #{tpu_custom_call.1} parent=5 // pred_fallthru
        _
      %p645 = scmp.le.s32.totalorder 2, %s11
      // Predicated region
      $region33: #{tpu_custom_call.1} parent=5 // pred_check
        %p646 = pneg %p645
      $region34: #{tpu_custom_call.1} parent=5 // pred_check_branch
        %648 = sbr.rel (%p646) target = $region36
      $region35: #{tpu_custom_call.1} parent=5 // pred_region
        %s649 = ssub.s32 %s11, 2
        // Predicated region
        $region37: #{tpu_custom_call.1} parent=35 // pred_check
          %p650 = pneg %p117
        $region38: #{tpu_custom_call.1} parent=35 // pred_check_branch
          %652 = sbr.rel (%p650) target = $region40
        $region39: #{tpu_custom_call.1} parent=35 // pred_region
          %s653 = sand.u32 %s102, 1
          %s654 = scalar_lea.sflag [#allocation3], %s653
          %s655 = sand.u32 %s102, 1
          %s656 = smul.addr %s655, 8
          %s657 = scalar_lea.vmem [#allocation2], %s656
          %659 = dma.done %s654, 128
        $region40: #{tpu_custom_call.1} parent=35 // pred_fallthru
          _
      $region36: #{tpu_custom_call.1} parent=5 // pred_fallthru
        _
    $region6: #{tpu_custom_call.1} parent=1 // loop_footer
      %s15 = sadd.s32 1, %s11
    $region7: #{tpu_custom_call.1} parent=1 // loop_footer_branch
      %10 = sbr.rel target = $region3
    $region8: #{tpu_custom_call.1} parent=1 // loop_exit
      _
    %660 = vsyncpa [#allocation3], 1
    %s661 = scalar_lea.sflag [#allocation3], 1
    %662 = vsyncpa %s661, 1

</llo_original>
